<compile_context>
chip_gen: v7x
topology: tpu7x:2x2x1
jax: 0.10.0
libtpu: 0.0.40
codegen_flags: <defaults>
</compile_context>

<pallas_src>
import functools
import math

import jax
import jax.numpy as jnp
from jax.experimental import pallas as pl
from jax.experimental.pallas import tpu as pltpu


_VMEM_LIMIT = 48 * 1024 * 1024  # fits v7x's 64 MiB/TC with headroom; fine on v5e/v6e


def _pick_tile(dim, target, align):
    """Largest tile <= target that divides dim, preferring `align`-aligned tiles."""
    if dim <= target:
        return dim
    t = (target // align) * align
    while t >= align:
        if dim % t == 0:
            return t
        t -= align
    # No aligned divisor <= target: the only correct fallback is the full dim,
    # but fail loudly if that would blow the VMEM budget (fatal on v7x's 64 MiB).
    if dim > 4 * target:
        raise ValueError(
            f"_pick_tile: no {align}-aligned divisor of {dim} <= {target}; "
            "refusing silent full-dimension fallback (VMEM hazard)")
    return dim


# ----------------------------- exact GELU helpers -----------------------------

def _erf(x):
    # Abramowitz & Stegun 7.1.26 rational approximation, |err| <= 1.5e-7,
    # i.e. exact to f32/bf16 precision.  Uses only exp/mul/add/select which are
    # guaranteed to lower in Mosaic (lax.erf has no guaranteed lowering rule).
    p = 0.3275911
    a1, a2, a3, a4, a5 = (0.254829592, -0.284496736, 1.421413741,
                          -1.453152027, 1.061405429)
    ax = jnp.abs(x)
    t = 1.0 / (1.0 + p * ax)
    poly = ((((a5 * t + a4) * t + a3) * t + a2) * t + a1) * t
    y = 1.0 - poly * jnp.exp(-ax * ax)
    return jnp.where(x >= 0, y, -y)


def _gelu_exact(x):
    # HuggingFace BERT default hidden_act='gelu' (erf form), not the tanh approx.
    return 0.5 * x * (1.0 + _erf(x * 0.7071067811865476))


# ----------------------------- dense (matmul + bias [+ gelu]) -----------------------------

def _dense_kernel(x_ref, w_ref, b_ref, o_ref, acc_ref, *, activation):
    k = pl.program_id(2)

    @pl.when(k == 0)
    def _init():
        acc_ref[...] = jnp.zeros_like(acc_ref)

    # bf16 operands straight into the MXU; f32 accumulation
    acc_ref[...] += jnp.dot(x_ref[...], w_ref[...],
                            preferred_element_type=jnp.float32)

    @pl.when(k == pl.num_programs(2) - 1)
    def _finalize():
        y = acc_ref[...] + b_ref[...].astype(jnp.float32)
        if activation == "gelu":
            y = _gelu_exact(y)
        o_ref[...] = y.astype(o_ref.dtype)


def dense(x, w, b, activation=None, *, out_dtype=None, tm=512, tn=512, tk=768):
    """x: (M, K) bf16, w: (K, N) bf16, b: (1, N) f32 -> (M, N) out_dtype."""
    M, K = x.shape
    _, N = w.shape
    if out_dtype is None:
        out_dtype = x.dtype
    tm = _pick_tile(M, tm, 8)
    tn = _pick_tile(N, tn, 128)
    tk = _pick_tile(K, tk, 128)
    kern = functools.partial(_dense_kernel, activation=activation)
    return pl.pallas_call(
        kern,
        out_shape=jax.ShapeDtypeStruct((M, N), out_dtype),
        grid_spec=pltpu.PrefetchScalarGridSpec(
            num_scalar_prefetch=0,
            grid=(M // tm, N // tn, K // tk),
            in_specs=[
                pl.BlockSpec((tm, tk), lambda i, j, k: (i, k)),
                pl.BlockSpec((tk, tn), lambda i, j, k: (k, j)),
                pl.BlockSpec((1, tn), lambda i, j, k: (0, j)),
            ],
            out_specs=pl.BlockSpec((tm, tn), lambda i, j, k: (i, j)),
            scratch_shapes=[pltpu.VMEM((tm, tn), jnp.float32)],
        ),
        compiler_params=pltpu.CompilerParams(
            dimension_semantics=("parallel", "parallel", "arbitrary"),
            vmem_limit_bytes=_VMEM_LIMIT,
        ),
    )(x, w, b)


# ------------------- dense + residual-add + LayerNorm fused epilogue -------------------

def _dense_res_ln_kernel(x_ref, w_ref, b_ref, r_ref, g_ref, bb_ref, o_ref,
                         acc_ref, *, eps):
    k = pl.program_id(1)

    @pl.when(k == 0)
    def _init():
        acc_ref[...] = jnp.zeros_like(acc_ref)

    acc_ref[...] += jnp.dot(x_ref[...], w_ref[...],
                            preferred_element_type=jnp.float32)

    @pl.when(k == pl.num_programs(1) - 1)
    def _finalize():
        y = (acc_ref[...] + b_ref[...].astype(jnp.float32)
             + r_ref[...].astype(jnp.float32))
        mu = jnp.mean(y, axis=-1, keepdims=True)
        yc = y - mu
        var = jnp.mean(yc * yc, axis=-1, keepdims=True)
        yn = yc * jax.lax.rsqrt(var + eps)
        o_ref[...] = (yn * g_ref[...].astype(jnp.float32)
                      + bb_ref[...].astype(jnp.float32)).astype(o_ref.dtype)


def dense_residual_layernorm(x, w, b, residual, gamma, beta,
                             *, eps=1e-12, tm=512, tk=768):
    """LayerNorm(x @ w + b + residual).  N (= hidden) is untiled so the LN
    reduction stays inside one block; grid = (row tiles, K-reduction)."""
    M, K = x.shape
    _, N = w.shape
    tm = _pick_tile(M, tm, 8)
    tk = _pick_tile(K, tk, 128)
    kern = functools.partial(_dense_res_ln_kernel, eps=eps)
    return pl.pallas_call(
        kern,
        out_shape=jax.ShapeDtypeStruct((M, N), x.dtype),
        grid_spec=pltpu.PrefetchScalarGridSpec(
            num_scalar_prefetch=0,
            grid=(M // tm, K // tk),
            in_specs=[
                pl.BlockSpec((tm, tk), lambda i, k: (i, k)),
                pl.BlockSpec((tk, N), lambda i, k: (k, 0)),
                pl.BlockSpec((1, N), lambda i, k: (0, 0)),
                pl.BlockSpec((tm, N), lambda i, k: (i, 0)),
                pl.BlockSpec((1, N), lambda i, k: (0, 0)),
                pl.BlockSpec((1, N), lambda i, k: (0, 0)),
            ],
            out_specs=pl.BlockSpec((tm, N), lambda i, k: (i, 0)),
            scratch_shapes=[pltpu.VMEM((tm, N), jnp.float32)],
        ),
        compiler_params=pltpu.CompilerParams(
            dimension_semantics=("parallel", "arbitrary"),
            vmem_limit_bytes=_VMEM_LIMIT,
        ),
    )(x, w, b, residual, gamma, beta)


# --------------------- fused embedding-sum + LayerNorm ---------------------

def _embed_ln_kernel(w_ref, p_ref, t_ref, g_ref, b_ref, o_ref, *, eps):
    # (word + pos + type) in f32, then LayerNorm; avoids materializing the
    # summed (B*S, H) activation in HBM before the LN read.
    x = (w_ref[0].astype(jnp.float32)
         + p_ref[...].astype(jnp.float32)
         + t_ref[...].astype(jnp.float32))          # (ts, H); type row broadcasts
    mu = jnp.mean(x, axis=-1, keepdims=True)
    xc = x - mu
    var = jnp.mean(xc * xc, axis=-1, keepdims=True)
    y = xc * jax.lax.rsqrt(var + eps)
    o_ref[0] = (y * g_ref[...].astype(jnp.float32)
                + b_ref[...].astype(jnp.float32)).astype(o_ref.dtype)


def embed_layernorm(word, pos, tok, gamma, beta, *, eps=1e-12, ts=256):
    """word: (B,S,H) bf16, pos: (S,H) bf16, tok: (1,H) bf16, gamma/beta: (1,H) f32."""
    B, S, H = word.shape
    ts = _pick_tile(S, ts, 8)
    kern = functools.partial(_embed_ln_kernel, eps=eps)
    return pl.pallas_call(
        kern,
        out_shape=jax.ShapeDtypeStruct((B, S, H), word.dtype),
        grid_spec=pltpu.PrefetchScalarGridSpec(
            num_scalar_prefetch=0,
            grid=(B, S // ts),
            in_specs=[
                pl.BlockSpec((1, ts, H), lambda b, s: (b, s, 0)),
                pl.BlockSpec((ts, H), lambda b, s: (s, 0)),
                pl.BlockSpec((1, H), lambda b, s: (0, 0)),
                pl.BlockSpec((1, H), lambda b, s: (0, 0)),
                pl.BlockSpec((1, H), lambda b, s: (0, 0)),
            ],
            out_specs=pl.BlockSpec((1, ts, H), lambda b, s: (b, s, 0)),
        ),
        compiler_params=pltpu.CompilerParams(
            dimension_semantics=("parallel", "parallel"),
            vmem_limit_bytes=_VMEM_LIMIT,
        ),
    )(word, pos, tok, gamma, beta)


# ----------------------------- flash-style attention -----------------------------
# Q/K/V stay in (B, S, H) layout; heads are handled inside the kernel with
# static lane slices of the H axis (no XLA head-split / merge transposes, so no
# extra HBM round trips of the activation).  The softmax scale is folded into
# the Q projection weights, so the inner loop does no scaling.

def _flash_attn_kernel(q_ref, k_ref, v_ref, bias_ref, o_ref,
                       m_scr, l_scr, acc_scr, *, nh, dh):
    kv = pl.program_id(2)

    @pl.when(kv == 0)
    def _init():
        m_scr[...] = jnp.full_like(m_scr, -jnp.inf)
        l_scr[...] = jnp.zeros_like(l_scr)
        acc_scr[...] = jnp.zeros_like(acc_scr)

    bias = bias_ref[0]                                    # (1, tkv) f32 mask bias

    for h in range(nh):                                   # static unroll over heads
        q = q_ref[0, :, pl.ds(h * dh, dh)]                # (tq, dh) bf16
        k = k_ref[0, :, pl.ds(h * dh, dh)]                # (tkv, dh)
        v = v_ref[0, :, pl.ds(h * dh, dh)]                # (tkv, dh)

        # scores for this (q-tile, kv-tile, head) only; never the full SxS matrix
        s = jax.lax.dot_general(q, k, (((1,), (1,)), ((), ())),
                                preferred_element_type=jnp.float32)
        s = s + bias                                      # broadcast over query rows

        m_prev = m_scr[h]                                 # (tq, 1)
        m_new = jnp.maximum(m_prev, jnp.max(s, axis=-1, keepdims=True))
        alpha = jnp.exp(m_prev - m_new)
        p = jnp.exp(s - m_new)
        l_scr[h] = alpha * l_scr[h] + jnp.sum(p, axis=-1, keepdims=True)
        acc_scr[h] = alpha * acc_scr[h] + jnp.dot(
            p.astype(v.dtype), v, preferred_element_type=jnp.float32)
        m_scr[h] = m_new

    @pl.when(kv == pl.num_programs(2) - 1)
    def _finalize():
        for h in range(nh):
            inv_l = pl.reciprocal(l_scr[h], approx=True)  # EUP, frees VALU
            o_ref[0, :, pl.ds(h * dh, dh)] = (acc_scr[h] * inv_l).astype(o_ref.dtype)


def flash_attention(q, k, v, bias, *, nh, tq=256, tkv=512):
    """q,k,v: (B, S, H) bf16; bias: (B, 1, S) f32 additive mask -> (B, S, H) bf16."""
    B, S, H = q.shape
    dh = H // nh
    tq = _pick_tile(S, tq, 8)
    tkv = _pick_tile(S, tkv, 128)
    kern = functools.partial(_flash_attn_kernel, nh=nh, dh=dh)
    return pl.pallas_call(
        kern,
        out_shape=jax.ShapeDtypeStruct((B, S, H), q.dtype),
        grid_spec=pltpu.PrefetchScalarGridSpec(
            num_scalar_prefetch=0,
            grid=(B, S // tq, S // tkv),
            in_specs=[
                pl.BlockSpec((1, tq, H), lambda b, qi, ki: (b, qi, 0)),
                pl.BlockSpec((1, tkv, H), lambda b, qi, ki: (b, ki, 0)),
                pl.BlockSpec((1, tkv, H), lambda b, qi, ki: (b, ki, 0)),
                pl.BlockSpec((1, 1, tkv), lambda b, qi, ki: (b, 0, ki)),
            ],
            out_specs=pl.BlockSpec((1, tq, H), lambda b, qi, ki: (b, qi, 0)),
            scratch_shapes=[
                pltpu.VMEM((nh, tq, 1), jnp.float32),     # running max m (per head)
                pltpu.VMEM((nh, tq, 1), jnp.float32),     # running sum l (per head)
                pltpu.VMEM((nh, tq, dh), jnp.float32),    # output accumulator
            ],
        ),
        compiler_params=pltpu.CompilerParams(
            dimension_semantics=("parallel", "parallel", "arbitrary"),
            vmem_limit_bytes=_VMEM_LIMIT,
        ),
    )(q, k, v, bias)


# ----------------------------- model (glue) -----------------------------

def init_params(key, cfg):
    H, I, L = cfg["hidden"], cfg["intermediate"], cfg["layers"]
    nl = cfg["num_labels"]
    nh = cfg["heads"]
    dh = H // nh
    att_scale = 1.0 / math.sqrt(dh)
    nl_pad = max(128, -(-nl // 128) * 128)   # lane-dense classifier output
    wdt = jnp.bfloat16                       # weights/embeddings/activations in bf16

    def norm(k, shape):
        return jax.random.normal(k, shape, jnp.float32) * 0.02

    keys = jax.random.split(key, 4 + L)
    cls_w = jnp.zeros((H, nl_pad), jnp.float32).at[:, :nl].set(norm(keys[3], (H, nl)))
    params = {
        "word_emb": norm(keys[0], (cfg["vocab"], H)).astype(wdt),
        "pos_emb": norm(keys[1], (cfg["max_pos"], H)).astype(wdt),
        "type_emb": norm(keys[2], (cfg["type_vocab"], H)).astype(wdt),
        "emb_ln_g": jnp.ones((1, H), jnp.float32),
        "emb_ln_b": jnp.zeros((1, H), jnp.float32),
        "cls_w": cls_w.astype(wdt),
        "cls_b": jnp.zeros((1, nl_pad), jnp.float32),
        "layers": [],
    }
    for l in range(L):
        lk = jax.random.split(keys[4 + l], 6)
        params["layers"].append({
            # the 1/sqrt(dh) attention scale is folded into the Q projection
            # (weight and bias), so the flash kernel never multiplies by it.
            "wq": (norm(lk[0], (H, H)) * att_scale).astype(wdt),
            "bq": jnp.zeros((1, H), jnp.float32),
            "wk": norm(lk[1], (H, H)).astype(wdt),
            "bk": jnp.zeros((1, H), jnp.float32),
            "wv": norm(lk[2], (H, H)).astype(wdt),
            "bv": jnp.zeros((1, H), jnp.float32),
            "wo": norm(lk[3], (H, H)).astype(wdt),
            "bo": jnp.zeros((1, H), jnp.float32),
            "ln1_g": jnp.ones((1, H), jnp.float32),
            "ln1_b": jnp.zeros((1, H), jnp.float32),
            "w1": norm(lk[4], (H, I)).astype(wdt),
            "b1": jnp.zeros((1, I), jnp.float32),
            "w2": norm(lk[5], (I, H)).astype(wdt),
            "b2": jnp.zeros((1, H), jnp.float32),
            "ln2_g": jnp.ones((1, H), jnp.float32),
            "ln2_b": jnp.zeros((1, H), jnp.float32),
        })
    return params


def bert_softmax_for_ner(params, input_ids, input_mask, cfg):
    """BertSoftmaxForNer forward: BERT encoder -> (dropout: identity) -> classifier."""
    B, S = input_ids.shape
    H = cfg["hidden"]
    nh = cfg["heads"]
    nl = cfg["num_labels"]

    # ---- embeddings: gathers stay in XLA; sum + LayerNorm fused in one kernel ----
    word = jnp.take(params["word_emb"], input_ids, axis=0)      # (B, S, H) bf16
    pos = params["pos_emb"][:S]                                 # (S, H)
    tok = params["type_emb"][0:1]                               # (1, H), token_type_ids = 0
    x = embed_layernorm(word, pos, tok,
                        params["emb_ln_g"], params["emb_ln_b"]).reshape(B * S, H)

    # additive attention-mask bias (f32), computed once and shared by every layer
    mask_bias = (1.0 - input_mask.astype(jnp.float32))[:, None, :] * -1e9  # (B,1,S)

    # ---- transformer encoder layers (all reshapes below are free; no transposes) ----
    for lp in params["layers"]:
        q = dense(x, lp["wq"], lp["bq"]).reshape(B, S, H)       # scale folded into wq
        k = dense(x, lp["wk"], lp["bk"]).reshape(B, S, H)
        v = dense(x, lp["wv"], lp["bv"]).reshape(B, S, H)

        ctx = flash_attention(q, k, v, mask_bias, nh=nh).reshape(B * S, H)

        # attention output projection fused with residual-add + LayerNorm
        x = dense_residual_layernorm(ctx, lp["wo"], lp["bo"], x,
                                     lp["ln1_g"], lp["ln1_b"])
        # FFN: up-proj + exact GELU, then down-proj fused with residual + LayerNorm
        h = dense(x, lp["w1"], lp["b1"], activation="gelu")
        x = dense_residual_layernorm(h, lp["w2"], lp["b2"], x,
                                     lp["ln2_g"], lp["ln2_b"])

    # ---- dropout: identity at inference (eval mode) ----
    # ---- classifier (lane-padded to 128 at init; slice back in wrapper) ----
    logits = dense(x, params["cls_w"], params["cls_b"],
                   out_dtype=jnp.float32)[:, :nl]               # (B*S, nl) f32
    return logits.reshape(B, S, nl)


# ----------------------------- main -----------------------------

if __name__ == "__main__":
    cfg = dict(vocab=100, hidden=32, heads=2, layers=2, intermediate=64,
               max_pos=16, type_vocab=2, num_labels=5)

    key = jax.random.PRNGKey(0)
    pkey, ikey = jax.random.split(key)
    params = init_params(pkey, cfg)

    B, S = 2, 8
    input_ids = jax.random.randint(ikey, (B, S), 0, cfg["vocab"], dtype=jnp.int32)
    input_mask = jnp.array([[1, 1, 1, 1, 1, 1, 1, 1],
                            [1, 1, 1, 1, 1, 1, 0, 0]], dtype=jnp.int32)

    logits = bert_softmax_for_ner(params, input_ids, input_mask, cfg)
    logits = jax.block_until_ready(logits)

    assert logits.shape == (B, S, cfg["num_labels"])
    assert logits.dtype == jnp.float32
    assert bool(jnp.all(jnp.isfinite(logits)))
    print("KERNEL_OK")
</pallas_src>

<mosaic_0001>
module attributes {stable_mosaic.version = 11 : i64} {
  func.func @_embed_ln_kernel(%arg0: i32, %arg1: i32, %arg2: memref<1x8x32xbf16, #tpu.memory_space<vmem>>, %arg3: memref<8x32xbf16, #tpu.memory_space<vmem>>, %arg4: memref<1x32xbf16, #tpu.memory_space<vmem>>, %arg5: memref<1x32xf32, #tpu.memory_space<vmem>>, %arg6: memref<1x32xf32, #tpu.memory_space<vmem>>, %arg7: memref<1x8x32xbf16, #tpu.memory_space<vmem>>) attributes {dimension_semantics = [#tpu.dimension_semantics<parallel>, #tpu.dimension_semantics<parallel>], iteration_bounds = array<i64: 2, 1>, scalar_prefetch = 0 : i64, scratch_operands = 0 : i64, tpu.core_type = #tpu.core_type<tc>, window_params = [{transform_indices = @transform_0, window_bounds = array<i64: 1, 8, 32>}, {transform_indices = @transform_1, window_bounds = array<i64: 8, 32>}, {pipeline_mode = #tpu.pipeline_mode<synchronous>, transform_indices = @transform_2, window_bounds = array<i64: 1, 32>}, {pipeline_mode = #tpu.pipeline_mode<synchronous>, transform_indices = @transform_3, window_bounds = array<i64: 1, 32>}, {pipeline_mode = #tpu.pipeline_mode<synchronous>, transform_indices = @transform_4, window_bounds = array<i64: 1, 32>}, {transform_indices = @transform_5, window_bounds = array<i64: 1, 8, 32>}]} {
    %c0 = arith.constant 0 : index
    %c0_0 = arith.constant 0 : index
    %c0_1 = arith.constant 0 : index
    %0 = vector.load %arg2[%c0, %c0_0, %c0_1] : memref<1x8x32xbf16, #tpu.memory_space<vmem>>, vector<1x8x32xbf16>
    %1 = vector.shape_cast %0 : vector<1x8x32xbf16> to vector<8x32xbf16>
    %2 = arith.extf %1 : vector<8x32xbf16> to vector<8x32xf32>
    %c0_2 = arith.constant 0 : index
    %c0_3 = arith.constant 0 : index
    %3 = vector.load %arg3[%c0_2, %c0_3] : memref<8x32xbf16, #tpu.memory_space<vmem>>, vector<8x32xbf16>
    %4 = arith.extf %3 : vector<8x32xbf16> to vector<8x32xf32>
    %5 = arith.addf %2, %4 : vector<8x32xf32>
    %c0_4 = arith.constant 0 : index
    %c0_5 = arith.constant 0 : index
    %6 = vector.load %arg4[%c0_4, %c0_5] : memref<1x32xbf16, #tpu.memory_space<vmem>>, vector<1x32xbf16>
    %7 = arith.extf %6 : vector<1x32xbf16> to vector<1x32xf32>
    %8 = vector.broadcast %7 : vector<1x32xf32> to vector<8x32xf32>
    %9 = arith.addf %5, %8 : vector<8x32xf32>
    %cst = arith.constant dense<0.000000e+00> : vector<8xf32>
    %10 = vector.multi_reduction <add>, %9, %cst [1] : vector<8x32xf32> to vector<8xf32>
    %11 = vector.shape_cast %10 : vector<8xf32> to vector<8x1xf32>
    %cst_6 = arith.constant 3.200000e+01 : f32
    %12 = vector.broadcast %cst_6 : f32 to vector<8x1xf32>
    %13 = arith.divf %11, %12 : vector<8x1xf32>
    %14 = vector.broadcast %13 : vector<8x1xf32> to vector<8x32xf32>
    %15 = arith.subf %9, %14 : vector<8x32xf32>
    %16 = arith.mulf %15, %15 : vector<8x32xf32>
    %cst_7 = arith.constant dense<0.000000e+00> : vector<8xf32>
    %17 = vector.multi_reduction <add>, %16, %cst_7 [1] : vector<8x32xf32> to vector<8xf32>
    %18 = vector.shape_cast %17 : vector<8xf32> to vector<8x1xf32>
    %cst_8 = arith.constant 3.200000e+01 : f32
    %19 = vector.broadcast %cst_8 : f32 to vector<8x1xf32>
    %20 = arith.divf %18, %19 : vector<8x1xf32>
    %cst_9 = arith.constant 9.99999996E-13 : f32
    %21 = vector.broadcast %cst_9 : f32 to vector<8x1xf32>
    %22 = arith.addf %20, %21 : vector<8x1xf32>
    %23 = math.rsqrt %22 : vector<8x1xf32>
    %24 = vector.broadcast %23 : vector<8x1xf32> to vector<8x32xf32>
    %25 = arith.mulf %15, %24 : vector<8x32xf32>
    %c0_10 = arith.constant 0 : index
    %c0_11 = arith.constant 0 : index
    %26 = vector.load %arg5[%c0_10, %c0_11] : memref<1x32xf32, #tpu.memory_space<vmem>>, vector<1x32xf32>
    %27 = vector.broadcast %26 : vector<1x32xf32> to vector<8x32xf32>
    %28 = arith.mulf %25, %27 : vector<8x32xf32>
    %c0_12 = arith.constant 0 : index
    %c0_13 = arith.constant 0 : index
    %29 = vector.load %arg6[%c0_12, %c0_13] : memref<1x32xf32, #tpu.memory_space<vmem>>, vector<1x32xf32>
    %30 = vector.broadcast %29 : vector<1x32xf32> to vector<8x32xf32>
    %31 = arith.addf %28, %30 : vector<8x32xf32>
    %32 = arith.truncf %31 : vector<8x32xf32> to vector<8x32xbf16>
    %c0_14 = arith.constant 0 : index
    %c0_15 = arith.constant 0 : index
    %c0_16 = arith.constant 0 : index
    %33 = vector.load %arg7[%c0_14, %c0_15, %c0_16] : memref<1x8x32xbf16, #tpu.memory_space<vmem>>, vector<1x8x32xbf16>
    %34 = vector.shape_cast %33 : vector<1x8x32xbf16> to vector<8x32xbf16>
    %35 = vector.shape_cast %32 : vector<8x32xbf16> to vector<1x8x32xbf16>
    tpu.vector_store %arg7[%c0_14, %c0_15, %c0_16], %35 {strides = array<i32>} : memref<1x8x32xbf16, #tpu.memory_space<vmem>>, vector<1x8x32xbf16>,
    return
  }
  func.func @transform_0(%arg0: i32, %arg1: i32) -> (i32, i32, i32) {
    %c0_i32 = arith.constant 0 : i32
    %c0_i32_0 = arith.constant 0 : i32
    return %arg0, %arg1, %c0_i32 : i32, i32, i32
  }
  func.func @transform_1(%arg0: i32, %arg1: i32) -> (i32, i32) {
    %c0_i32 = arith.constant 0 : i32
    %c0_i32_0 = arith.constant 0 : i32
    return %arg1, %c0_i32 : i32, i32
  }
  func.func @transform_2(%arg0: i32, %arg1: i32) -> (i32, i32) {
    %c0_i32 = arith.constant 0 : i32
    %c0_i32_0 = arith.constant 0 : i32
    %c0_i32_1 = arith.constant 0 : i32
    return %c0_i32, %c0_i32_0 : i32, i32
  }
  func.func @transform_3(%arg0: i32, %arg1: i32) -> (i32, i32) {
    %c0_i32 = arith.constant 0 : i32
    %c0_i32_0 = arith.constant 0 : i32
    %c0_i32_1 = arith.constant 0 : i32
    return %c0_i32, %c0_i32_0 : i32, i32
  }
  func.func @transform_4(%arg0: i32, %arg1: i32) -> (i32, i32) {
    %c0_i32 = arith.constant 0 : i32
    %c0_i32_0 = arith.constant 0 : i32
    %c0_i32_1 = arith.constant 0 : i32
    return %c0_i32, %c0_i32_0 : i32, i32
  }
  func.func @transform_5(%arg0: i32, %arg1: i32) -> (i32, i32, i32) {
    %c0_i32 = arith.constant 0 : i32
    %c0_i32_0 = arith.constant 0 : i32
    return %arg0, %arg1, %c0_i32 : i32, i32, i32
  }
}

</mosaic_0001>

<llo_original>
// kernel: tpu_custom_call.1
$region0: #{tpu_custom_call.1}
  #allocation0 [shape = 'u32[]', space=smem, size = 0x4, offset = 0x4, fixed_abs, tag = 'smem constant byte address 0x4 - core index']
  #allocation1 [shape = 'u32[144,128]{1,0:T(1,128)}', space=vmem, size = 0x12000, scoped, tag = 'internal scratch']
  %s0 = inlined_call_operand.hbm [shape: bf16[2,8,32], index: 0, kind: input, shape index: {}]
  %s1 = inlined_call_operand.hbm [shape: bf16[8,32], index: 1, kind: input, shape index: {}]
  %s2 = inlined_call_operand.vmem [shape: bf16[1,32], index: 2, kind: input, shape index: {}]
  %s3 = inlined_call_operand.vmem [shape: f32[1,32], index: 3, kind: input, shape index: {}]
  %s4 = inlined_call_operand.vmem [shape: f32[1,32], index: 4, kind: input, shape index: {}]
  %s5 = inlined_call_operand.hbm [shape: bf16[2,8,32], index: 5, kind: output, shape index: {}]
  %s6 = sld [smem:[#allocation0]]
  $region61: #{tpu_custom_call.1} parent=0
    _
  %s8 = ssub.s32 1, %s6
  %s9 = scalar_select 0, %s8, %s6
  $region1: #{tpu_custom_call.1} parent=0
    #allocation2 [shape = 'u8[4096]{0}', space=vmem, size = 0x1000, scoped, tag = 'input window, operand 0']
    #allocation3 [shape = 's32[2]{0}', space=sflag, size = 0x8, scoped, tag = 'scoped memory for tpu_custom_call.1']
    #allocation4 [shape = 's32[2]{0}', space=sflag, size = 0x8, scoped, tag = 'scoped memory for tpu_custom_call.1']
    #allocation5 [shape = 'u8[2048]{0}', space=vmem, size = 0x800, scoped, tag = 'input window, operand 1, single buffered']
    #allocation6 [shape = 's32[1]{0}', space=sflag, size = 0x4, scoped, tag = 'scoped memory for tpu_custom_call.1']
    #allocation7 [shape = 'u8[4096]{0}', space=vmem, size = 0x1000, scoped, tag = 'output window, operand 0']
    %10 = vsyncpa [#allocation3], 0
    %s11 = scalar_lea.sflag [#allocation3], 1
    %12 = vsyncpa %s11, 0
    %13 = vsyncpa [#allocation6], 0
    %14 = vsyncpa [#allocation4], 0
    %s15 = scalar_lea.sflag [#allocation4], 1
    %16 = vsyncpa %s15, 0
    loop: start=0, step=1, limit=4
    $region2: #{tpu_custom_call.1} parent=1 // loop_pre_header
      _
    $region3: #{tpu_custom_call.1} parent=1 // loop_header
      %s18 = sphi 0, %s22
      %p19 = scmp.ge.s32.totalorder %s18, 4
      %s25 = sphi 0, %s37
      %s26 = sphi 0, %s33
      %s27 = sphi 0, %s25
      %s28 = sphi 0, %s26
      %s29 = sphi 0, %s27
      %s30 = sphi 0, %s28
      %s42 = sphi 0, %s44
      %s45 = sphi 0, %s42
      %s46 = sphi 0, %s45
      %s62 = sphi 0, %s46
      %s68 = sphi 0, %s70
      %s71 = sphi 0, %s68
      %s72 = sphi 0, %s71
      %s88 = sphi 0, %s72
      %s92 = sphi 0, %s92
      %s94 = sphi 0, %s92
      %s95 = sphi 0, %s94
      %s109 = sphi 0, %s95
      %s113 = sphi 0, %s113
      %s115 = sphi 0, %s113
      %s116 = sphi 0, %s115
      %s130 = sphi 0, %s116
      %s134 = sphi 0, %s134
      %s136 = sphi 0, %s134
      %s137 = sphi 0, %s136
      %s151 = sphi 0, %s137
      %s159 = sphi 0, %s161
      %s162 = sphi 0, %s159
      %s163 = sphi 0, %s162
      %s179 = sphi 0, %s163
    $region4: #{tpu_custom_call.1} parent=1 // loop_header_branch
      %21 = sbr.rel (%p19) target = $region8
    $region5: #{tpu_custom_call.1} parent=1 // loop_body
      %s23 = ssub.s32 %s18, 1
      %s24 = ssub.s32 %s18, 2
      %s31 = sadd.s32 1, %s26
      %p32 = scmp.ge.s32.totalorder %s31, 1
      %s33 = scalar_select %p32, 0, %s31
      %s34 = sadd.s32 1, %s25
      %s35 = scalar_select %p32, %s34, %s25
      %p36 = scmp.ge.s32.totalorder %s35, 2
      %s37 = scalar_select %p36, 0, %s35
      %s38 = ssub.s32 %s25, %s37
      %s39 = ssub.s32 %s26, %s33
      %s40 = sor.u32 %s38, %s39
      %p41 = scmp.eq.s32.totalorder %s40, 0
      %s43 = sadd.s32 %s42, 1
      %s44 = scalar_select %p41, %s42, %s43
      %p47 = pneg %p41
      %p48 = scmp.eq.s32.totalorder %s18, 1
      %p49 = por %p47, %p48
      %p50 = scmp.ne.s32.totalorder %s42, %s45
      %p51 = scmp.eq.s32.totalorder %s18, 0
      %p52 = por %p50, %p51
      %p53 = scmp.ne.s32.totalorder %s42, %s45
      %p54 = scmp.eq.s32.totalorder %s23, 1
      %p55 = por %p53, %p54
      %p56 = scmp.ne.s32.totalorder %s45, %s46
      %p57 = scmp.eq.s32.totalorder %s23, 0
      %p58 = por %p56, %p57
      %p59 = scmp.ne.s32.totalorder %s45, %s46
      %p60 = scmp.eq.s32.totalorder %s24, 1
      %p61 = por %p59, %p60
      %p63 = scmp.ne.s32.totalorder %s46, %s62
      %p64 = scmp.eq.s32.totalorder %s24, 0
      %p65 = por %p63, %p64
      %s66 = ssub.s32 %s26, %s33
      %p67 = scmp.eq.s32.totalorder %s66, 0
      %s69 = sadd.s32 %s68, 1
      %s70 = scalar_select %p67, %s68, %s69
      %p73 = pneg %p67
      %p74 = scmp.eq.s32.totalorder %s18, 1
      %p75 = por %p73, %p74
      %p76 = scmp.ne.s32.totalorder %s68, %s71
      %p77 = scmp.eq.s32.totalorder %s18, 0
      %p78 = por %p76, %p77
      %p79 = scmp.ne.s32.totalorder %s68, %s71
      %p80 = scmp.eq.s32.totalorder %s23, 1
      %p81 = por %p79, %p80
      %p82 = scmp.ne.s32.totalorder %s71, %s72
      %p83 = scmp.eq.s32.totalorder %s23, 0
      %p84 = por %p82, %p83
      %p85 = scmp.ne.s32.totalorder %s71, %s72
      %p86 = scmp.eq.s32.totalorder %s24, 1
      %p87 = por %p85, %p86
      %p89 = scmp.ne.s32.totalorder %s72, %s88
      %p90 = scmp.eq.s32.totalorder %s24, 0
      %p91 = por %p89, %p90
      %s93 = sadd.s32 %s92, 1
      %p96 = scmp.eq.s32.totalorder %s18, 1
      %p97 = scmp.ne.s32.totalorder %s92, %s94
      %p98 = scmp.eq.s32.totalorder %s18, 0
      %p99 = por %p97, %p98
      %p100 = scmp.ne.s32.totalorder %s92, %s94
      %p101 = scmp.eq.s32.totalorder %s23, 1
      %p102 = por %p100, %p101
      %p103 = scmp.ne.s32.totalorder %s94, %s95
      %p104 = scmp.eq.s32.totalorder %s23, 0
      %p105 = por %p103, %p104
      %p106 = scmp.ne.s32.totalorder %s94, %s95
      %p107 = scmp.eq.s32.totalorder %s24, 1
      %p108 = por %p106, %p107
      %p110 = scmp.ne.s32.totalorder %s95, %s109
      %p111 = scmp.eq.s32.totalorder %s24, 0
      %p112 = por %p110, %p111
      %s114 = sadd.s32 %s113, 1
      %p117 = scmp.eq.s32.totalorder %s18, 1
      %p118 = scmp.ne.s32.totalorder %s113, %s115
      %p119 = scmp.eq.s32.totalorder %s18, 0
      %p120 = por %p118, %p119
      %p121 = scmp.ne.s32.totalorder %s113, %s115
      %p122 = scmp.eq.s32.totalorder %s23, 1
      %p123 = por %p121, %p122
      %p124 = scmp.ne.s32.totalorder %s115, %s116
      %p125 = scmp.eq.s32.totalorder %s23, 0
      %p126 = por %p124, %p125
      %p127 = scmp.ne.s32.totalorder %s115, %s116
      %p128 = scmp.eq.s32.totalorder %s24, 1
      %p129 = por %p127, %p128
      %p131 = scmp.ne.s32.totalorder %s116, %s130
      %p132 = scmp.eq.s32.totalorder %s24, 0
      %p133 = por %p131, %p132
      %s135 = sadd.s32 %s134, 1
      %p138 = scmp.eq.s32.totalorder %s18, 1
      %p139 = scmp.ne.s32.totalorder %s134, %s136
      %p140 = scmp.eq.s32.totalorder %s18, 0
      %p141 = por %p139, %p140
      %p142 = scmp.ne.s32.totalorder %s134, %s136
      %p143 = scmp.eq.s32.totalorder %s23, 1
      %p144 = por %p142, %p143
      %p145 = scmp.ne.s32.totalorder %s136, %s137
      %p146 = scmp.eq.s32.totalorder %s23, 0
      %p147 = por %p145, %p146
      %p148 = scmp.ne.s32.totalorder %s136, %s137
      %p149 = scmp.eq.s32.totalorder %s24, 1
      %p150 = por %p148, %p149
      %p152 = scmp.ne.s32.totalorder %s137, %s151
      %p153 = scmp.eq.s32.totalorder %s24, 0
      %p154 = por %p152, %p153
      %s155 = ssub.s32 %s25, %s37
      %s156 = ssub.s32 %s26, %s33
      %s157 = sor.u32 %s155, %s156
      %p158 = scmp.eq.s32.totalorder %s157, 0
      %s160 = sadd.s32 %s159, 1
      %s161 = scalar_select %p158, %s159, %s160
      %p164 = pneg %p158
      %p165 = scmp.eq.s32.totalorder %s18, 1
      %p166 = por %p164, %p165
      %p167 = scmp.ne.s32.totalorder %s159, %s162
      %p168 = scmp.eq.s32.totalorder %s18, 0
      %p169 = por %p167, %p168
      %p170 = scmp.ne.s32.totalorder %s159, %s162
      %p171 = scmp.eq.s32.totalorder %s23, 1
      %p172 = por %p170, %p171
      %p173 = scmp.ne.s32.totalorder %s162, %s163
      %p174 = scmp.eq.s32.totalorder %s23, 0
      %p175 = por %p173, %p174
      %p176 = scmp.ne.s32.totalorder %s162, %s163
      %p177 = scmp.eq.s32.totalorder %s24, 1
      %p178 = por %p176, %p177
      %p180 = scmp.ne.s32.totalorder %s163, %s179
      %p181 = scmp.eq.s32.totalorder %s24, 0
      %p182 = por %p180, %p181
      %p183 = scmp.le.s32.totalorder 1, %s18
      %p184 = scmp.lt.s32.totalorder %s18, 3
      %p185 = pnand %p183, %p184
      %p186 = pneg %p185
      // Predicated region
      $region9: #{tpu_custom_call.1} parent=5 // pred_check
        _
      $region10: #{tpu_custom_call.1} parent=5 // pred_check_branch
        %188 = sbr.rel (%p185) target = $region12
      $region11: #{tpu_custom_call.1} parent=5 // pred_region
        %s189 = ssub.s32 %s18, 1
        // Predicated region
        $region13: #{tpu_custom_call.1} parent=11 // pred_check
          %p190 = pneg %p84
        $region14: #{tpu_custom_call.1} parent=11 // pred_check_branch
          %192 = sbr.rel (%p190) target = $region16
        $region15: #{tpu_custom_call.1} parent=11 // pred_region
          %s194 = ssub.s32 64, 64
          %195 = vsyncadd [#allocation6], %s194
          %s196 = smul.addr %s28, 64
          %s197 = scalar_lea.hbm %s1, %s196
          %s199 = sshll.u32 [#allocation5], 4
          %s200 = int_to_ptr.vmem [resolvable:$true] %s199
          %202 = dma.hbm_to_vmem [thread:$0]  %s197, 64, %s200, [#allocation6]
        $region16: #{tpu_custom_call.1} parent=11 // pred_fallthru
          _
        // Predicated region
        $region17: #{tpu_custom_call.1} parent=11 // pred_check
          %p203 = pneg %p105
        $region18: #{tpu_custom_call.1} parent=11 // pred_check_branch
          %205 = sbr.rel (%p203) target = $region20
        $region19: #{tpu_custom_call.1} parent=11 // pred_region
          _
        $region20: #{tpu_custom_call.1} parent=11 // pred_fallthru
          _
        // Predicated region
        $region21: #{tpu_custom_call.1} parent=11 // pred_check
          %p206 = pneg %p126
        $region22: #{tpu_custom_call.1} parent=11 // pred_check_branch
          %208 = sbr.rel (%p206) target = $region24
        $region23: #{tpu_custom_call.1} parent=11 // pred_region
          _
        $region24: #{tpu_custom_call.1} parent=11 // pred_fallthru
          _
        // Predicated region
        $region25: #{tpu_custom_call.1} parent=11 // pred_check
          %p209 = pneg %p147
        $region26: #{tpu_custom_call.1} parent=11 // pred_check_branch
          %211 = sbr.rel (%p209) target = $region28
        $region27: #{tpu_custom_call.1} parent=11 // pred_region
          _
        $region28: #{tpu_custom_call.1} parent=11 // pred_fallthru
          _
      $region12: #{tpu_custom_call.1} parent=5 // pred_fallthru
        _
      %p212 = scmp.lt.s32.totalorder %s18, 2
      // Predicated region
      $region29: #{tpu_custom_call.1} parent=5 // pred_check
        %p213 = pneg %p212
      $region30: #{tpu_custom_call.1} parent=5 // pred_check_branch
        %215 = sbr.rel (%p213) target = $region32
      $region31: #{tpu_custom_call.1} parent=5 // pred_region
        // Predicated region
        $region33: #{tpu_custom_call.1} parent=31 // pred_check
          %p216 = pneg %p52
        $region34: #{tpu_custom_call.1} parent=31 // pred_check_branch
          %218 = sbr.rel (%p216) target = $region36
        $region35: #{tpu_custom_call.1} parent=31 // pred_region
          %s219 = sand.u32 %s42, 1
          %s220 = scalar_lea.sflag [#allocation3], %s219
          %s221 = sand.u32 %s42, 1
          %s222 = smul.addr %s221, 4
          %s223 = scalar_lea.vmem [#allocation2], %s222
          %s225 = ssub.s32 64, 64
          %226 = vsyncadd %s220, %s225
          %s227 = sadd.s32 %s26, %s25
          %s228 = smul.addr %s227, 64
          %s229 = scalar_lea.hbm %s0, %s228
          %s231 = sshll.u32 %s223, 4
          %s232 = int_to_ptr.vmem [resolvable:$true] %s231
          %234 = dma.hbm_to_vmem [thread:$0]  %s229, 64, %s232, %s220
        $region36: #{tpu_custom_call.1} parent=31 // pred_fallthru
          _
      $region32: #{tpu_custom_call.1} parent=5 // pred_fallthru
        _
      %p235 = scmp.le.s32.totalorder 1, %s18
      %p236 = scmp.lt.s32.totalorder %s18, 3
      %p237 = pnand %p235, %p236
      %p238 = pneg %p237
      // Predicated region
      $region37: #{tpu_custom_call.1} parent=5 // pred_check
        _
      $region38: #{tpu_custom_call.1} parent=5 // pred_check_branch
        %240 = sbr.rel (%p237) target = $region40
      $region39: #{tpu_custom_call.1} parent=5 // pred_region
        %s241 = ssub.s32 %s18, 1
        %s242 = sand.u32 %s45, 1
        %s243 = scalar_lea.sflag [#allocation3], %s242
        %s244 = sand.u32 %s45, 1
        %s245 = smul.addr %s244, 4
        %s246 = scalar_lea.vmem [#allocation2], %s245
        // Predicated region
        $region41: #{tpu_custom_call.1} parent=39 // pred_check
          %p247 = pneg %p58
        $region42: #{tpu_custom_call.1} parent=39 // pred_check_branch
          %249 = sbr.rel (%p247) target = $region44
        $region43: #{tpu_custom_call.1} parent=39 // pred_region
          %250 = dma.done %s243, 64
        $region44: #{tpu_custom_call.1} parent=39 // pred_fallthru
          _
        // Predicated region
        $region45: #{tpu_custom_call.1} parent=39 // pred_check
          %p251 = pneg %p84
        $region46: #{tpu_custom_call.1} parent=39 // pred_check_branch
          %253 = sbr.rel (%p251) target = $region48
        $region47: #{tpu_custom_call.1} parent=39 // pred_region
          %254 = dma.done [#allocation6], 64
        $region48: #{tpu_custom_call.1} parent=39 // pred_fallthru
          _
        %s255 = sand.u32 %s45, 1
        %s256 = scalar_lea.sflag [#allocation3], %s255
        %s257 = sand.u32 %s45, 1
        %s258 = smul.addr %s257, 4
        %s259 = scalar_lea.vmem [#allocation2], %s258
        %p260 = pneg %p58
        %p261 = pneg %p55
        %p262 = pneg %p84
        %p263 = pneg %p81
        %p264 = pneg %p105
        %p265 = pneg %p102
        %p266 = pneg %p126
        %p267 = pneg %p123
        %p268 = pneg %p147
        %p269 = pneg %p144
        %p270 = pneg %p175
        %p271 = pneg %p172
        %s272 = sand.u32 %s162, 1
        %s273 = scalar_lea.sflag [#allocation4], %s272
        %s274 = sand.u32 %s162, 1
        %s275 = smul.addr %s274, 4
        %s276 = scalar_lea.vmem [#allocation7], %s275
        %v277 = vld [vmem:[%s246] sm:$0xf]
        %v278 = vunpack.c.l.bf16 %v277
        %v279 = vld [vmem:[#allocation5] sm:$0xf]
        %v280 = vunpack.c.l.bf16 %v279
        %v281 = vadd.f32 %v278, %v280
        %v282 = vld [vmem:[%s2] sm:$0x1]
        %v283 = vunpack.c.l.bf16 %v282
        %v284 = vlaneseq
        %v285 = vshrl.u32 %v284, 7
        %v286 = vsub.s32 0, %v285
        %v287 = vrot.slane %v283, %v286
        %v288 = vadd.f32 %v281, %v287
        %vm289 = vcmask 261120
        %v290 = vsel %vm289, %v288, 0.0
        %291 = vadd.xlane.f32.xlu0 %v290
        %v292 = vpop.xlane.xlu0 %291
        %v293 = vrcp.pop 32.0
        %v294 = vmul.f32 %v292, %v293
        %v295 = vsub.f32 %v288, %v294
        %v296 = vmul.f32 %v295, %v295
        %v297 = vsel %vm289, %v296, 0.0
        %298 = vadd.xlane.f32.xlu0 %v297
        %v299 = vpop.xlane.xlu0 %298
        %v300 = vmul.f32 %v299, %v293
        %v301 = vadd.f32 %v300, 1e-12
        %v302 = vrsqrt.pop %v301
        %v303 = vmul.f32 %v295, %v302
        %v304 = vld [vmem:[%s3] sm:$0x1]
        %v306 = vlaneseq
        %v307 = vshrl.u32 %v306, 7
        %v308 = vsub.s32 0, %v307
        %v309 = vrot.slane %v304, %v308
        %v311 = vmul.f32 %v303, %v309
        %v312 = vld [vmem:[%s4] sm:$0x1]
        %v314 = vlaneseq
        %v315 = vshrl.u32 %v314, 7
        %v316 = vsub.s32 0, %v315
        %v317 = vrot.slane %v312, %v316
        %v319 = vadd.f32 %v311, %v317
        %v320 = vpack.c.bf16 %v319, %v319
        %vm321 = vcmask 257024
        %322 = vst.msk [vmem:[%s276] sm:$0xf] %vm321, %v320
        %s323 = sand.u32 %s162, 1
        %s324 = scalar_lea.sflag [#allocation4], %s323
        %s325 = sand.u32 %s162, 1
        %s326 = smul.addr %s325, 4
        %s327 = scalar_lea.vmem [#allocation7], %s326
        // Predicated region
        $region49: #{tpu_custom_call.1} parent=39 // pred_check
          %p328 = pneg %p172
        $region50: #{tpu_custom_call.1} parent=39 // pred_check_branch
          %330 = sbr.rel (%p328) target = $region52
        $region51: #{tpu_custom_call.1} parent=39 // pred_region
          %s332 = ssub.s32 64, 64
          %333 = vsyncadd %s324, %s332
          %s334 = sadd.s32 %s28, %s27
          %s335 = smul.addr %s334, 64
          %s336 = scalar_lea.hbm %s5, %s335
          %s338 = sshll.u32 %s327, 4
          %s339 = int_to_ptr.vmem [resolvable:$true] %s338
          %341 = dma.vmem_to_hbm [thread:$0]  %s339, 64, %s336, %s324
        $region52: #{tpu_custom_call.1} parent=39 // pred_fallthru
          _
      $region40: #{tpu_custom_call.1} parent=5 // pred_fallthru
        _
      %p342 = scmp.le.s32.totalorder 2, %s18
      // Predicated region
      $region53: #{tpu_custom_call.1} parent=5 // pred_check
        %p343 = pneg %p342
      $region54: #{tpu_custom_call.1} parent=5 // pred_check_branch
        %345 = sbr.rel (%p343) target = $region56
      $region55: #{tpu_custom_call.1} parent=5 // pred_region
        %s346 = ssub.s32 %s18, 2
        // Predicated region
        $region57: #{tpu_custom_call.1} parent=55 // pred_check
          %p347 = pneg %p178
        $region58: #{tpu_custom_call.1} parent=55 // pred_check_branch
          %349 = sbr.rel (%p347) target = $region60
        $region59: #{tpu_custom_call.1} parent=55 // pred_region
          %s350 = sand.u32 %s163, 1
          %s351 = scalar_lea.sflag [#allocation4], %s350
          %s352 = sand.u32 %s163, 1
          %s353 = smul.addr %s352, 4
          %s354 = scalar_lea.vmem [#allocation7], %s353
          %355 = dma.done %s351, 64
        $region60: #{tpu_custom_call.1} parent=55 // pred_fallthru
          _
      $region56: #{tpu_custom_call.1} parent=5 // pred_fallthru
        _
    $region6: #{tpu_custom_call.1} parent=1 // loop_footer
      %s22 = sadd.s32 1, %s18
    $region7: #{tpu_custom_call.1} parent=1 // loop_footer_branch
      %17 = sbr.rel target = $region3
    $region8: #{tpu_custom_call.1} parent=1 // loop_exit
      _
    %356 = vsyncpa [#allocation3], 1
    %s357 = scalar_lea.sflag [#allocation3], 1
    %358 = vsyncpa %s357, 1
    %359 = vsyncpa [#allocation6], 1
    %360 = vsyncpa [#allocation4], 1
    %s361 = scalar_lea.sflag [#allocation4], 1
    %362 = vsyncpa %s361, 1

</llo_original>
